<compile_context>
chip_gen: v7x
topology: tpu7x:2x2x1
jax: 0.10.0
libtpu: 0.0.40
codegen_flags: <defaults>
</compile_context>

<pallas_src>
import functools

import jax
import jax.numpy as jnp
from jax.experimental import pallas as pl
from jax.experimental.pallas import tpu as pltpu

LANE = 128      # f32 lane width
SUBLANE = 8     # f32 sublane height
MAX_TB = 512    # batch rows per grid step (>=256 for v6e/v7x MXU, mult. of 128 for v5e)


def _round_up(n, m):
    return -(-n // m) * m


def _lstm_head_kernel(x_ref, wih_t_ref, w_head_ref, b_head_ref, out_ref, *, hidden):
    """One batch tile: packed-gate LSTM step (h0 = c0 = 0) + fused fc1/fc2 head.

    wih_t packs the live gates (i, g, o) into consecutive `hidden`-lane chunks of a
    single 128-aligned lane block; the gate bias is folded into the matmul via a
    ones-column of x. The f-gate and the W_hh / c0 terms are algebraically zero.
    """
    # (TB, dk) @ (dk, gw) -> (TB, gw); lanes [0:3H) are the packed i|g|o pre-activations.
    gates = jnp.dot(x_ref[...], wih_t_ref[...], preferred_element_type=jnp.float32)

    # One sigmoid / one tanh pass over the packed vreg, then static lane slices.
    sig = jax.nn.sigmoid(gates)
    th = jnp.tanh(gates)
    i = sig[:, 0 * hidden:1 * hidden]
    g = th[:, 1 * hidden:2 * hidden]
    o = sig[:, 2 * hidden:3 * hidden]
    h = o * jnp.tanh(i * g)                              # (TB, H); c = i*g since c0 = 0

    # fc1 -> dropout(identity in eval) -> fc2, pre-fused into a single (H, go) matmul.
    out_ref[...] = (jnp.dot(h, w_head_ref[...], preferred_element_type=jnp.float32)
                    + b_head_ref[...])


def make_lstm_forward(params):
    """Prepare packed weight layouts ONCE; return a jitted forward(x) -> (B, 1, out)."""
    H = params["w_hh"].shape[1]
    D = params["w_ih"].shape[1]
    out_size = params["w2"].shape[0]

    dk = _round_up(D + 1, SUBLANE)      # contraction dim: features + 1 bias column, 8-aligned
    gw = _round_up(3 * H, LANE)         # packed i|g|o gate lanes (128-aligned)
    go = _round_up(out_size, LANE)      # lane-dense head output

    w_ih = params["w_ih"]                               # (4H, D), PyTorch gate order i, f, g, o
    b = params["b_ih"] + params["b_hh"]                 # (4H,)

    def gate_block(k):  # gate k -> (dk, H): rows [0:D) weights^T, row D bias, rest zero
        blk = jnp.zeros((dk, H), jnp.float32)
        blk = blk.at[:D, :].set(w_ih[k * H:(k + 1) * H, :].T)
        blk = blk.at[D, :].set(b[k * H:(k + 1) * H])
        return blk

    # Keep only i (0), g (2), o (3); the f-gate (1) multiplies c0 == 0.
    wih_t = jnp.concatenate([gate_block(0), gate_block(2), gate_block(3)], axis=1)  # (dk, 3H)
    wih_t = jnp.pad(wih_t, ((0, 0), (0, gw - 3 * H)))                               # (dk, gw)

    # Fuse fc1 -> Dropout(identity in eval) -> fc2 into one matmul.
    w_head = params["w1"].T @ params["w2"].T                                # (H, out)
    b_head = params["b1"] @ params["w2"].T + params["b2"]                   # (out,)
    w_head = jnp.pad(w_head, ((0, 0), (0, go - out_size)))                  # (H, go)
    b_head = jnp.pad(b_head, (0, go - out_size))[None, :]                   # (1, go)

    wih_t, w_head, b_head = jax.device_put((wih_t, w_head, b_head))

    kernel = functools.partial(_lstm_head_kernel, hidden=H)

    @jax.jit
    def forward(x):                                     # x: (B, input_size), float32
        bsz, d_in = x.shape
        bp8 = _round_up(bsz, SUBLANE)
        tb = min(MAX_TB, bp8)                           # batch tile (multiple of 8)
        bp = _round_up(bp8, tb)                         # padded batch, multiple of tb
        nb = bp // tb

        # Pad batch to bp rows, features to dk lanes; column D carries the folded gate bias.
        x_p = jnp.pad(x, ((0, bp - bsz), (0, dk - d_in)))
        x_p = x_p.at[:, D].set(1.0)

        out = pl.pallas_call(
            kernel,
            out_shape=jax.ShapeDtypeStruct((bp, go), jnp.float32),
            grid=(nb,),
            in_specs=[
                pl.BlockSpec((tb, dk), lambda i: (i, 0)),   # batch tile of x
                pl.BlockSpec((dk, gw), lambda i: (0, 0)),   # gate weights, VMEM-resident
                pl.BlockSpec((H, go), lambda i: (0, 0)),    # fused head weights, resident
                pl.BlockSpec((1, go), lambda i: (0, 0)),    # fused head bias, resident
            ],
            out_specs=pl.BlockSpec((tb, go), lambda i: (i, 0)),
            compiler_params=pltpu.CompilerParams(
                dimension_semantics=("parallel",),
            ),
            cost_estimate=pl.CostEstimate(
                flops=2 * bp * (dk * gw + H * go),
                transcendentals=3 * bp * gw,
                bytes_accessed=4 * (bp * dk + dk * gw + H * go + go + bp * go),
            ),
        )(x_p, wih_t, w_head, b_head)
        return out[:bsz, None, :out_size]               # (B, 1, output_size)

    return forward


def lstm_forward_ref(x, p):
    """Pure-JAX reference replicating the PyTorch forward (unfused, full gates)."""
    H = p["w_hh"].shape[1]
    gates = x @ p["w_ih"].T + p["b_ih"] + p["b_hh"]     # h0 = 0 -> W_hh term vanishes
    i = jax.nn.sigmoid(gates[:, :H])
    g = jnp.tanh(gates[:, 2 * H:3 * H])
    o = jax.nn.sigmoid(gates[:, 3 * H:])
    h = o * jnp.tanh(i * g)                             # c = f*c0 + i*g = i*g
    y1 = h @ p["w1"].T + p["b1"]
    y2 = y1 @ p["w2"].T + p["b2"]                       # dropout is identity in eval
    return y2[:, None, :]


if __name__ == "__main__":
    B = 2
    input_size = 8          # len(train_item[0].split()) + 1 in the original script; synthetic choice
    hidden_size = 16        # matches `hidden_size = 16` in the original script
    output_size = 4

    key = jax.random.PRNGKey(0)
    ks = jax.random.split(key, 10)

    # Deterministic PyTorch-style uniform init (bound = 1/sqrt(fan)).
    k_lstm = 1.0 / (hidden_size ** 0.5)
    k_fc1 = 1.0 / (hidden_size ** 0.5)
    k_fc2 = 1.0 / ((hidden_size // 2) ** 0.5)
    u = lambda k, shape, b: jax.random.uniform(k, shape, jnp.float32, minval=-b, maxval=b)

    params = {
        "w_ih": u(ks[0], (4 * hidden_size, input_size), k_lstm),
        "w_hh": u(ks[1], (4 * hidden_size, hidden_size), k_lstm),
        "b_ih": u(ks[2], (4 * hidden_size,), k_lstm),
        "b_hh": u(ks[3], (4 * hidden_size,), k_lstm),
        "w1":   u(ks[4], (hidden_size // 2, hidden_size), k_fc1),
        "b1":   u(ks[5], (hidden_size // 2,), k_fc1),
        "w2":   u(ks[6], (output_size, hidden_size // 2), k_fc2),
        "b2":   u(ks[7], (output_size,), k_fc2),
    }

    forward = make_lstm_forward(params)       # one-time layout prep + jit

    # Small batch (single grid step).
    x = jax.random.normal(ks[8], (B, input_size), jnp.float32)
    out = jax.block_until_ready(forward(x))
    ref = lstm_forward_ref(x, params)
    assert out.shape == (B, 1, output_size), out.shape
    assert jnp.allclose(out, ref, atol=1e-5, rtol=1e-5), float(jnp.max(jnp.abs(out - ref)))

    # Larger batch exercising the batch grid (2 tiles of 512 rows, ragged tail padded).
    xb = jax.random.normal(ks[9], (600, input_size), jnp.float32)
    outb = jax.block_until_ready(forward(xb))
    refb = lstm_forward_ref(xb, params)
    assert outb.shape == (600, 1, output_size), outb.shape
    assert jnp.allclose(outb, refb, atol=1e-5, rtol=1e-5), float(jnp.max(jnp.abs(outb - refb)))

    print("KERNEL_OK")
</pallas_src>

<mosaic_0001>
module attributes {stable_mosaic.version = 11 : i64} {
  func.func @_lstm_head_kernel(%arg0: i32, %arg1: memref<8x16xf32, #tpu.memory_space<vmem>>, %arg2: memref<16x128xf32, #tpu.memory_space<vmem>>, %arg3: memref<16x128xf32, #tpu.memory_space<vmem>>, %arg4: memref<1x128xf32, #tpu.memory_space<vmem>>, %arg5: memref<8x128xf32, #tpu.memory_space<vmem>>) attributes {dimension_semantics = [#tpu.dimension_semantics<parallel>], iteration_bounds = array<i64: 1>, scalar_prefetch = 0 : i64, scratch_operands = 0 : i64, tpu.core_type = #tpu.core_type<tc>, window_params = [{transform_indices = @transform_0, window_bounds = array<i64: 8, 16>}, {pipeline_mode = #tpu.pipeline_mode<synchronous>, transform_indices = @transform_1, window_bounds = array<i64: 16, 128>}, {pipeline_mode = #tpu.pipeline_mode<synchronous>, transform_indices = @transform_2, window_bounds = array<i64: 16, 128>}, {pipeline_mode = #tpu.pipeline_mode<synchronous>, transform_indices = @transform_3, window_bounds = array<i64: 1, 128>}, {transform_indices = @transform_4, window_bounds = array<i64: 8, 128>}]} {
    %c0 = arith.constant 0 : index
    %c0_0 = arith.constant 0 : index
    %0 = vector.load %arg1[%c0, %c0_0] : memref<8x16xf32, #tpu.memory_space<vmem>>, vector<8x16xf32>
    %c0_1 = arith.constant 0 : index
    %c0_2 = arith.constant 0 : index
    %1 = vector.load %arg2[%c0_1, %c0_2] : memref<16x128xf32, #tpu.memory_space<vmem>>, vector<16x128xf32>
    %cst = arith.constant dense<0.000000e+00> : vector<8x128xf32>
    %2 = tpu.matmul %0, %1, %cst {dimension_numbers = #tpu.dot_dimension_numbers<[1], [0], [0], [1], [0, 0, 1, 1], [], []>} : vector<8x16xf32>, vector<16x128xf32>, vector<8x128xf32> -> vector<8x128xf32>
    %3 = arith.negf %2 : vector<8x128xf32>
    %4 = math.exp %3 : vector<8x128xf32>
    %cst_3 = arith.constant 1.000000e+00 : f32
    %5 = vector.broadcast %cst_3 : f32 to vector<8x128xf32>
    %6 = arith.addf %5, %4 : vector<8x128xf32>
    %7 = arith.divf %5, %6 : vector<8x128xf32>
    %8 = math.tanh %2 : vector<8x128xf32>
    %9 = vector.extract_strided_slice %7 {offsets = [0, 0], sizes = [8, 16], strides = [1, 1]} : vector<8x128xf32> to vector<8x16xf32>
    %10 = vector.extract_strided_slice %8 {offsets = [0, 16], sizes = [8, 16], strides = [1, 1]} : vector<8x128xf32> to vector<8x16xf32>
    %11 = vector.extract_strided_slice %7 {offsets = [0, 32], sizes = [8, 16], strides = [1, 1]} : vector<8x128xf32> to vector<8x16xf32>
    %12 = arith.mulf %9, %10 : vector<8x16xf32>
    %13 = math.tanh %12 : vector<8x16xf32>
    %14 = arith.mulf %11, %13 : vector<8x16xf32>
    %c0_4 = arith.constant 0 : index
    %c0_5 = arith.constant 0 : index
    %15 = vector.load %arg3[%c0_4, %c0_5] : memref<16x128xf32, #tpu.memory_space<vmem>>, vector<16x128xf32>
    %cst_6 = arith.constant dense<0.000000e+00> : vector<8x128xf32>
    %16 = tpu.matmul %14, %15, %cst_6 {dimension_numbers = #tpu.dot_dimension_numbers<[1], [0], [0], [1], [0, 0, 1, 1], [], []>} : vector<8x16xf32>, vector<16x128xf32>, vector<8x128xf32> -> vector<8x128xf32>
    %c0_7 = arith.constant 0 : index
    %c0_8 = arith.constant 0 : index
    %17 = vector.load %arg4[%c0_7, %c0_8] : memref<1x128xf32, #tpu.memory_space<vmem>>, vector<1x128xf32>
    %18 = vector.broadcast %17 : vector<1x128xf32> to vector<8x128xf32>
    %19 = arith.addf %16, %18 : vector<8x128xf32>
    %c0_9 = arith.constant 0 : index
    %c0_10 = arith.constant 0 : index
    %20 = vector.load %arg5[%c0_9, %c0_10] : memref<8x128xf32, #tpu.memory_space<vmem>>, vector<8x128xf32>
    tpu.vector_store %arg5[%c0_9, %c0_10], %19 {strides = array<i32>} : memref<8x128xf32, #tpu.memory_space<vmem>>, vector<8x128xf32>,
    return
  }
  func.func @transform_0(%arg0: i32) -> (i32, i32) {
    %c0_i32 = arith.constant 0 : i32
    %c0_i32_0 = arith.constant 0 : i32
    return %arg0, %c0_i32 : i32, i32
  }
  func.func @transform_1(%arg0: i32) -> (i32, i32) {
    %c0_i32 = arith.constant 0 : i32
    %c0_i32_0 = arith.constant 0 : i32
    %c0_i32_1 = arith.constant 0 : i32
    return %c0_i32, %c0_i32_0 : i32, i32
  }
  func.func @transform_2(%arg0: i32) -> (i32, i32) {
    %c0_i32 = arith.constant 0 : i32
    %c0_i32_0 = arith.constant 0 : i32
    %c0_i32_1 = arith.constant 0 : i32
    return %c0_i32, %c0_i32_0 : i32, i32
  }
  func.func @transform_3(%arg0: i32) -> (i32, i32) {
    %c0_i32 = arith.constant 0 : i32
    %c0_i32_0 = arith.constant 0 : i32
    %c0_i32_1 = arith.constant 0 : i32
    return %c0_i32, %c0_i32_0 : i32, i32
  }
  func.func @transform_4(%arg0: i32) -> (i32, i32) {
    %c0_i32 = arith.constant 0 : i32
    %c0_i32_0 = arith.constant 0 : i32
    return %arg0, %c0_i32 : i32, i32
  }
}

</mosaic_0001>

<llo_original>
// kernel: forward.1
$region0: #{forward.1}
  #allocation0 [shape = 'u32[]', space=smem, size = 0x4, offset = 0x4, fixed_abs, tag = 'smem constant byte address 0x4 - core index']
  #allocation1 [shape = 'u32[144,128]{1,0:T(1,128)}', space=vmem, size = 0x12000, scoped, tag = 'internal scratch']
  %s0 = inlined_call_operand.vmem [shape: f32[8,16], index: 0, kind: input, shape index: {}]
  %s1 = inlined_call_operand.vmem [shape: f32[16,128], index: 1, kind: input, shape index: {}]
  %s2 = inlined_call_operand.vmem [shape: f32[16,128], index: 2, kind: input, shape index: {}]
  %s3 = inlined_call_operand.vmem [shape: f32[1,128], index: 3, kind: input, shape index: {}]
  %s4 = inlined_call_operand.vmem [shape: f32[8,128], index: 4, kind: output, shape index: {}]
  %s5 = sld [smem:[#allocation0]]
  $region26: #{forward.1} parent=0
    _
  %s7 = ssub.s32 1, %s5
  %s8 = scalar_select 0, %s7, %s5
  // Predicated region
  $region2: #{forward.1} parent=0 // pred_check
    _
  $region3: #{forward.1} parent=0 // pred_check_branch
    %10 = sbr.rel (0) target = $region5
  $region4: #{forward.1} parent=0 // pred_region
    _
  $region5: #{forward.1} parent=0 // pred_fallthru
    _
  // Predicated region
  $region6: #{forward.1} parent=0 // pred_check
    _
  $region7: #{forward.1} parent=0 // pred_check_branch
    %12 = sbr.rel (0) target = $region9
  $region8: #{forward.1} parent=0 // pred_region
    _
  $region9: #{forward.1} parent=0 // pred_fallthru
    _
  // Predicated region
  $region10: #{forward.1} parent=0 // pred_check
    _
  $region11: #{forward.1} parent=0 // pred_check_branch
    %14 = sbr.rel (0) target = $region13
  $region12: #{forward.1} parent=0 // pred_region
    _
  $region13: #{forward.1} parent=0 // pred_fallthru
    _
  // Predicated region
  $region14: #{forward.1} parent=0 // pred_check
    _
  $region15: #{forward.1} parent=0 // pred_check_branch
    %16 = sbr.rel (0) target = $region17
  $region16: #{forward.1} parent=0 // pred_region
    _
  $region17: #{forward.1} parent=0 // pred_fallthru
    _
  %v17 = vld [vmem:[%s0] sm:$0xff]
  %v18 = vld [vmem:[%s1] sm:$0xff]
  %v19 = vld [vmem:[%s1 + $0x8] sm:$0xff]
  %vm20 = vcmask 130048
  %v22 = vsel %vm20, %v17, 0
  %24 = vmatprep.subr.mxu0 0.0
  %25 = vmatpush1.msra.mxu0 %v18
  %26 = vmatprep.subr.mxu0 0.0
  %27 = vmatpush1.msra.mxu0 %v19
  %28 = vmatprep.subr.mxu0 0.0
  %29 = vmatpush1.msra.mxu0 0.0
  %30 = vmatprep.subr.mxu0 0.0
  %31 = vmatpush1.msra.mxu0 0.0
  %32 = vmatprep.subr.mxu0 0.0
  %33 = vmatpush1.msra.mxu0 0.0
  %34 = vmatprep.subr.mxu0 0.0
  %35 = vmatpush1.msra.mxu0 0.0
  %36 = vmatprep.subr.mxu0 0.0
  %37 = vmatpush1.msra.mxu0 0.0
  %38 = vmatprep.subr.mxu0 0.0
  %39 = vmatpush1.msra.mxu0 0.0
  %40 = vmatprep.subr.mxu0 0.0
  %41 = vmatpush1.msra.mxu0 0.0
  %42 = vmatprep.subr.mxu0 0.0
  %43 = vmatpush1.msra.mxu0 0.0
  %44 = vmatprep.subr.mxu0 0.0
  %45 = vmatpush1.msra.mxu0 0.0
  %46 = vmatprep.subr.mxu0 0.0
  %47 = vmatpush1.msra.mxu0 0.0
  %48 = vmatprep.subr.mxu0 0.0
  %49 = vmatpush1.msra.mxu0 0.0
  %50 = vmatprep.subr.mxu0 0.0
  %51 = vmatpush1.msra.mxu0 0.0
  %52 = vmatprep.subr.mxu0 0.0
  %53 = vmatpush1.msra.mxu0 0.0
  %54 = vmatprep.subr.mxu0 0.0
  %55 = vmatpush1.msra.mxu0 0.0
  %56 = vmatprep.subr.mxu0 0.0
  %57 = vmatpush1.msra.mxu0 0.0
  %58 = vmatprep.subr.mxu0 0.0
  %59 = vmatpush1.msra.mxu0 0.0
  %60 = vmatprep.subr.mxu0 0.0
  %61 = vmatpush1.msra.mxu0 0.0
  %62 = vmatprep.subr.mxu0 0.0
  %63 = vmatpush1.msra.mxu0 0.0
  %64 = vmatprep.subr.mxu0 0.0
  %65 = vmatpush1.msra.mxu0 0.0
  %66 = vmatprep.subr.mxu0 0.0
  %67 = vmatpush1.msra.mxu0 0.0
  %68 = vmatprep.subr.mxu0 0.0
  %69 = vmatpush1.msra.mxu0 0.0
  %70 = vmatprep.subr.mxu0 0.0
  %71 = vmatpush1.msra.mxu0 0.0
  %72 = vmatprep.subr.mxu0 0.0
  %73 = vmatpush1.msra.mxu0 0.0
  %74 = vmatprep.subr.mxu0 0.0
  %75 = vmatpush1.msra.mxu0 0.0
  %76 = vmatprep.subr.mxu0 0.0
  %77 = vmatpush1.msra.mxu0 0.0
  %78 = vmatprep.subr.mxu0 0.0
  %79 = vmatpush1.msra.mxu0 0.0
  %80 = vmatprep.subr.mxu0 0.0
  %81 = vmatpush1.msra.mxu0 0.0
  %82 = vmatprep.subr.mxu0 0.0
  %83 = vmatpush1.msra.mxu0 0.0
  %84 = vmatprep.subr.mxu0 0.0
  %85 = vmatpush1.msra.mxu0 0.0
  %86 = vmatprep.subr.mxu0 0.0
  %87 = vmatpush1.msra.mxu0 0.0
  %88 = vmatprep.mubr.f32.mxu0 0.0
  %89 = vmatmul.mubr.f32.gmra.mrb[0].mxu0 %v22
  %v90 = vpop.f32.mrb[0].mxu0
  %v91 = vadd.f32 0.0, %v90
  %v92 = vpop.f32.mrb[0].mxu0
  %93 = vdwg.mxu0
  %v94 = vxor.u32 %v91, 2147483648
  %v95 = vmul.f32 %v94, 1.442695
  %v96 = vpow.pop %v95
  %v97 = vadd.f32 %v96, 1.0
  %v98 = vrcp.pop %v97
  %v99 = vmul.f32 1.0, %v98
  %v100 = vtanh.pop %v91
  %102 = vrot.lane.b32.xlu0 %v100, 112
  %v103 = vpop.permute.xlu0 %102
  %v105 = vmul.f32 %v99, %v103
  %v106 = vtanh.pop %v105
  %108 = vrot.lane.b32.xlu0 %v106, 32
  %v109 = vpop.permute.xlu0 %108
  %v111 = vmul.f32 %v99, %v109
  %v112 = vld [vmem:[%s2] sm:$0xff]
  %v113 = vld [vmem:[%s2 + $0x8] sm:$0xff]
  %v114 = vld [vmem:[%s3] sm:$0x1]
  %v116 = vlaneseq
  %v117 = vshrl.u32 %v116, 7
  %v118 = vsub.s32 0, %v117
  %v119 = vrot.slane %v114, %v118
  %122 = vrot.lane.b32.xlu0 %v111, 96
  %v123 = vpop.permute.xlu0 %122
  %v124 = vsel %vm20, %v123, 0
  %126 = vmatprep.subr.mxu0 0.0
  %127 = vmatpush1.msra.mxu0 %v112
  %128 = vmatprep.subr.mxu0 0.0
  %129 = vmatpush1.msra.mxu0 %v113
  %130 = vmatprep.subr.mxu0 0.0
  %131 = vmatpush1.msra.mxu0 0.0
  %132 = vmatprep.subr.mxu0 0.0
  %133 = vmatpush1.msra.mxu0 0.0
  %134 = vmatprep.subr.mxu0 0.0
  %135 = vmatpush1.msra.mxu0 0.0
  %136 = vmatprep.subr.mxu0 0.0
  %137 = vmatpush1.msra.mxu0 0.0
  %138 = vmatprep.subr.mxu0 0.0
  %139 = vmatpush1.msra.mxu0 0.0
  %140 = vmatprep.subr.mxu0 0.0
  %141 = vmatpush1.msra.mxu0 0.0
  %142 = vmatprep.subr.mxu0 0.0
  %143 = vmatpush1.msra.mxu0 0.0
  %144 = vmatprep.subr.mxu0 0.0
  %145 = vmatpush1.msra.mxu0 0.0
  %146 = vmatprep.subr.mxu0 0.0
  %147 = vmatpush1.msra.mxu0 0.0
  %148 = vmatprep.subr.mxu0 0.0
  %149 = vmatpush1.msra.mxu0 0.0
  %150 = vmatprep.subr.mxu0 0.0
  %151 = vmatpush1.msra.mxu0 0.0
  %152 = vmatprep.subr.mxu0 0.0
  %153 = vmatpush1.msra.mxu0 0.0
  %154 = vmatprep.subr.mxu0 0.0
  %155 = vmatpush1.msra.mxu0 0.0
  %156 = vmatprep.subr.mxu0 0.0
  %157 = vmatpush1.msra.mxu0 0.0
  %158 = vmatprep.subr.mxu0 0.0
  %159 = vmatpush1.msra.mxu0 0.0
  %160 = vmatprep.subr.mxu0 0.0
  %161 = vmatpush1.msra.mxu0 0.0
  %162 = vmatprep.subr.mxu0 0.0
  %163 = vmatpush1.msra.mxu0 0.0
  %164 = vmatprep.subr.mxu0 0.0
  %165 = vmatpush1.msra.mxu0 0.0
  %166 = vmatprep.subr.mxu0 0.0
  %167 = vmatpush1.msra.mxu0 0.0
  %168 = vmatprep.subr.mxu0 0.0
  %169 = vmatpush1.msra.mxu0 0.0
  %170 = vmatprep.subr.mxu0 0.0
  %171 = vmatpush1.msra.mxu0 0.0
  %172 = vmatprep.subr.mxu0 0.0
  %173 = vmatpush1.msra.mxu0 0.0
  %174 = vmatprep.subr.mxu0 0.0
  %175 = vmatpush1.msra.mxu0 0.0
  %176 = vmatprep.subr.mxu0 0.0
  %177 = vmatpush1.msra.mxu0 0.0
  %178 = vmatprep.subr.mxu0 0.0
  %179 = vmatpush1.msra.mxu0 0.0
  %180 = vmatprep.subr.mxu0 0.0
  %181 = vmatpush1.msra.mxu0 0.0
  %182 = vmatprep.subr.mxu0 0.0
  %183 = vmatpush1.msra.mxu0 0.0
  %184 = vmatprep.subr.mxu0 0.0
  %185 = vmatpush1.msra.mxu0 0.0
  %186 = vmatprep.subr.mxu0 0.0
  %187 = vmatpush1.msra.mxu0 0.0
  %188 = vmatprep.subr.mxu0 0.0
  %189 = vmatpush1.msra.mxu0 0.0
  %190 = vmatprep.mubr.f32.mxu0 0.0
  %191 = vmatmul.mubr.f32.gmra.mrb[0].mxu0 %v124
  %v192 = vpop.f32.mrb[0].mxu0
  %v193 = vadd.f32 %v119, %v192
  %v194 = vpop.f32.mrb[0].mxu0
  %195 = vdwg.mxu0
  %196 = vst [vmem:[%s4] sm:$0xff] %v193
  // Predicated region
  $region18: #{forward.1} parent=0 // pred_check
    _
  $region19: #{forward.1} parent=0 // pred_check_branch
    %198 = sbr.rel (0) target = $region21
  $region20: #{forward.1} parent=0 // pred_region
    _
  $region21: #{forward.1} parent=0 // pred_fallthru
    _
  // Predicated region
  $region22: #{forward.1} parent=0 // pred_check
    _
  $region23: #{forward.1} parent=0 // pred_check_branch
    %200 = sbr.rel (0) target = $region25
  $region24: #{forward.1} parent=0 // pred_region
    _
  $region25: #{forward.1} parent=0 // pred_fallthru
    _

</llo_original>
